<compile_context>
chip_gen: v5e
topology: v5e:2x2
jax: 0.10.0
libtpu: 0.0.40
codegen_flags: <defaults>
</compile_context>

<pallas_src>
import functools

import numpy as np

import jax
import jax.numpy as jnp
from jax import lax
from jax.experimental import pallas as pl
from jax.experimental.pallas import tpu as pltpu


# -----------------------------------------------------------------------------
# Host-side constants
# -----------------------------------------------------------------------------
def _interp_matrix_np(n_in, n_out):
    """Bilinear interpolation matrix (n_out, n_in), align_corners=True, numpy."""
    if n_in == 1:
        return np.ones((n_out, 1), np.float32)
    pos = np.arange(n_out, dtype=np.float64) * (n_in - 1) / (n_out - 1)
    j0 = np.clip(np.floor(pos), 0, n_in - 1).astype(np.int64)
    j1 = np.clip(j0 + 1, 0, n_in - 1)
    frac = (pos - j0).astype(np.float32)
    m = np.zeros((n_out, n_in), np.float32)
    m[np.arange(n_out), j0] += (1.0 - frac)
    m[np.arange(n_out), j1] += frac
    return m


# -----------------------------------------------------------------------------
# Fused Pallas kernel (one grid step == one batch image, channel-major (C, L))
# -----------------------------------------------------------------------------
def _make_block_kernel(k, w_p, L, off):

    def conv_flat(in_p, w_ref, b_ref):
        """'same' conv evaluated on the padded flat grid.

        in_p: (C, L) activation on the padded grid, halo rows/cols == 0.
        Returns (C_out, L).  Interior lanes are exact; halo lanes hold finite
        garbage that the caller masks (or the wrapper drops).  Every im2col
        tap is a contiguous lane slice -> lane-dense slab build.
        """
        c = in_p.shape[0]
        if off:
            z = jnp.zeros((c, off), jnp.float32)
            ext = jnp.concatenate([z, in_p, z], axis=1)          # (C, L + 2*off)
        else:
            ext = in_p
        taps = []
        for kh in range(k):
            for kw in range(k):
                d = kh * w_p + kw
                taps.append(ext[:, d:d + L])                     # (C, L) lane slice
        slab = jnp.concatenate(taps, axis=0)                     # (k*k*C, L)
        return (jnp.dot(w_ref[...], slab, preferred_element_type=jnp.float32)
                + b_ref[...])                                    # (C_out, L)

    def kernel(x_ref, xcat_ref, up_mat_ref, mask_up_ref, mask_full_ref,
               wup_ref, bup_ref, we1_ref, be1_ref, we2_ref, be2_ref, o_ref):
        f32 = jnp.float32

        # ---- 1) bilinear x2 upsample (align_corners=True), fused with the
        #         placement into the zero-haloed padded grid: ONE matmul. ----
        up = jnp.dot(x_ref[0].astype(f32), up_mat_ref[...],
                     preferred_element_type=f32)                 # (c_in, L)

        # ---- 2) upconv ('same', bias, no BN/ReLU).  mask_up zeroes the halo
        #         AND the bottom/right region, reproducing PyTorch's zero-pad
        #         of the upconv output to x_cat's spatial size. ----
        xu = conv_flat(up, wup_ref, bup_ref) * mask_up_ref[...]  # (c_half, L)

        # ---- 3) channel concat: cheap sublane concat, never hits HBM. ----
        cat = jnp.concatenate([xu, xcat_ref[0].astype(f32)], axis=0)  # (c_in, L)

        # ---- 4) convE1 + folded eval-BN + ReLU; re-zero the halo so it acts
        #         as convE2's 'same' padding. ----
        a1 = jnp.maximum(conv_flat(cat, we1_ref, be1_ref), 0.0) * mask_full_ref[...]

        # ---- 5) convE2 + folded eval-BN + ReLU.  Halo garbage is dropped by
        #         the wrapper, so no final mask is needed. ----
        a2 = jnp.maximum(conv_flat(a1, we2_ref, be2_ref), 0.0)   # (c_half, L)

        # ---- 6) Dropout == identity (eval).  Lane-dense store (c_half, L). ----
        o_ref[0] = a2.astype(o_ref.dtype)

    return kernel


# -----------------------------------------------------------------------------
# Wrapper
# -----------------------------------------------------------------------------
def expanding_block_forward(x_nchw, xcat_nchw, params):
    n, c_in, h2, w2 = x_nchw.shape
    _, c_half, h, w = xcat_nchw.shape
    k = params["upconv_w"].shape[0]
    assert k % 2 == 1, "padding='same' folding here assumes odd kernel size"
    h_up, w_up = 2 * h2, 2 * w2
    assert h_up <= h and w_up <= w, "skip connection must be >= upsampled size"

    pad = (k - 1) // 2
    h_p, w_p = h + 2 * pad, w + 2 * pad
    L = h_p * w_p
    off = pad * w_p + pad

    # --- host-built constants: upsample+placement matrix and halo masks ---
    a_h = _interp_matrix_np(h2, h_up)                       # (h_up, h2)
    a_w = _interp_matrix_np(w2, w_up)                       # (w_up, w2)
    ah_pad = np.zeros((h_p, h2), np.float32); ah_pad[pad:pad + h_up] = a_h
    aw_pad = np.zeros((w_p, w2), np.float32); aw_pad[pad:pad + w_up] = a_w
    # up_flat = x_flat @ up_mat  with all 'same'/bottom-right padding baked in.
    up_mat = jnp.asarray(np.kron(ah_pad, aw_pad).T.copy())  # (h2*w2, L)

    m_up = np.zeros((h_p, w_p), np.float32); m_up[pad:pad + h_up, pad:pad + w_up] = 1.0
    m_full = np.zeros((h_p, w_p), np.float32); m_full[pad:pad + h, pad:pad + w] = 1.0
    mask_up = jnp.asarray(m_up.reshape(1, L))
    mask_full = jnp.asarray(m_full.reshape(1, L))

    # --- flatten conv weights to (C_out, k*k*C_in); fold eval-BN into E1/E2 ---
    f32 = jnp.float32

    def flat_w(w_hwio, scale=None):
        wf = w_hwio.astype(f32)
        if scale is not None:
            wf = wf * scale[None, None, None, :]
        # (k,k,I,O) -> (O,k,k,I) -> (O, k*k*I); tap-major, channel-minor rows.
        return jnp.transpose(wf, (3, 0, 1, 2)).reshape(wf.shape[3], -1)

    w_up_f = flat_w(params["upconv_w"])                                # (c_half, k*k*c_in)
    b_up = params["upconv_b"].astype(f32).reshape(c_half, 1)
    s1 = params["bnE1_scale"].astype(f32); t1 = params["bnE1_shift"].astype(f32)
    s2 = params["bnE2_scale"].astype(f32); t2 = params["bnE2_shift"].astype(f32)
    w_e1 = flat_w(params["convE1_w"], s1)                              # (c_half, k*k*c_in)
    b_e1 = (params["convE1_b"].astype(f32) * s1 + t1).reshape(c_half, 1)
    w_e2 = flat_w(params["convE2_w"], s2)                              # (c_half, k*k*c_half)
    b_e2 = (params["convE2_b"].astype(f32) * s2 + t2).reshape(c_half, 1)

    # --- inputs: pre-flatten x; pre-pad + pre-flatten x_cat (outside kernel) ---
    x_flat = x_nchw.reshape(n, c_in, h2 * w2)
    xcat_p = jnp.pad(xcat_nchw, ((0, 0), (0, 0), (pad, pad), (pad, pad))
                     ).reshape(n, c_half, L)

    kernel = _make_block_kernel(k, w_p, L, off)
    out = pl.pallas_call(
        kernel,
        out_shape=jax.ShapeDtypeStruct((n, c_half, L), x_nchw.dtype),
        grid=(n,),
        in_specs=[
            pl.BlockSpec((1, c_in, h2 * w2), lambda i: (i, 0, 0)),     # x_flat
            pl.BlockSpec((1, c_half, L), lambda i: (i, 0, 0)),         # x_cat padded
            pl.BlockSpec((h2 * w2, L), lambda i: (0, 0)),              # upsample matrix
            pl.BlockSpec((1, L), lambda i: (0, 0)),                    # mask_up
            pl.BlockSpec((1, L), lambda i: (0, 0)),                    # mask_full
            pl.BlockSpec((c_half, k * k * c_in), lambda i: (0, 0)),    # w_up
            pl.BlockSpec((c_half, 1), lambda i: (0, 0)),               # b_up
            pl.BlockSpec((c_half, k * k * c_in), lambda i: (0, 0)),    # w_e1 (BN folded)
            pl.BlockSpec((c_half, 1), lambda i: (0, 0)),               # b_e1
            pl.BlockSpec((c_half, k * k * c_half), lambda i: (0, 0)),  # w_e2 (BN folded)
            pl.BlockSpec((c_half, 1), lambda i: (0, 0)),               # b_e2
        ],
        out_specs=pl.BlockSpec((1, c_half, L), lambda i: (i, 0, 0)),
        compiler_params=pltpu.CompilerParams(dimension_semantics=("parallel",)),
    )(x_flat, xcat_p, up_mat, mask_up, mask_full,
      w_up_f, b_up, w_e1, b_e1, w_e2, b_e2)

    # drop the halo: (N, C, L) -> (N, C, H, W)  (pure layout plumbing in XLA)
    out = out.reshape(n, c_half, h_p, w_p)[:, :, pad:pad + h, pad:pad + w]
    return out


# -----------------------------------------------------------------------------
# Pure-JAX reference (correctness check)
# -----------------------------------------------------------------------------
def _ref_forward(x_nchw, xcat_nchw, params):
    n, c_in, h2, w2 = x_nchw.shape
    _, c_half, h, w = xcat_nchw.shape
    k = params["upconv_w"].shape[0]
    pad = (k - 1) // 2

    x = jnp.transpose(x_nchw, (0, 2, 3, 1)).astype(jnp.float32)
    x_cat = jnp.transpose(xcat_nchw, (0, 2, 3, 1)).astype(jnp.float32)

    a_h = jnp.asarray(_interp_matrix_np(h2, 2 * h2))
    a_w = jnp.asarray(_interp_matrix_np(w2, 2 * w2))
    x = jnp.einsum("ph,nhwc->npwc", a_h, x)
    x = jnp.einsum("qw,npwc->npqc", a_w, x)

    def conv(z, wk, b):
        return lax.conv_general_dilated(
            z, wk.astype(jnp.float32), (1, 1),
            [(pad, pad), (pad, pad)],
            dimension_numbers=("NHWC", "HWIO", "NHWC")) + b.reshape(1, 1, 1, -1)

    x = conv(x, params["upconv_w"], params["upconv_b"])
    if x.shape[1:3] != (h, w):
        x = jnp.pad(x, ((0, 0), (0, h - x.shape[1]), (0, w - x.shape[2]), (0, 0)))
    x = jnp.concatenate([x, x_cat], axis=-1)
    x = conv(x, params["convE1_w"], params["convE1_b"])
    x = jax.nn.relu(x * params["bnE1_scale"] + params["bnE1_shift"])
    x = conv(x, params["convE2_w"], params["convE2_b"])
    x = jax.nn.relu(x * params["bnE2_scale"] + params["bnE2_shift"])
    return jnp.transpose(x, (0, 3, 1, 2))


# -----------------------------------------------------------------------------
# Parameters (deterministic, synthetic; eval-mode BN running stats)
# -----------------------------------------------------------------------------
def make_params(key, in_channels, kernel_size):
    out_channels = in_channels // 2
    k = kernel_size
    ks = jax.random.split(key, 14)

    def kaiming(kk, c_out, c_in):
        fan_in = c_in * k * k
        std = (2.0 / fan_in) ** 0.5
        return jax.random.normal(kk, (k, k, c_in, c_out), jnp.float32) * std

    def bn(k_g, k_b, k_m, k_v):
        eps = 1e-5
        gamma = 0.5 + jax.random.uniform(k_g, (out_channels,), jnp.float32)
        beta = 0.1 * jax.random.normal(k_b, (out_channels,), jnp.float32)
        mean = 0.1 * jax.random.normal(k_m, (out_channels,), jnp.float32)
        var = 0.5 + jax.random.uniform(k_v, (out_channels,), jnp.float32)
        scale = gamma / jnp.sqrt(var + eps)
        shift = beta - mean * scale
        return scale, shift

    bn1_scale, bn1_shift = bn(ks[6], ks[7], ks[8], ks[9])
    bn2_scale, bn2_shift = bn(ks[10], ks[11], ks[12], ks[13])

    return {
        # conv weights stored as (K, K, Cin, Cout) == HWIO
        "upconv_w": 0.1 * jax.random.normal(
            ks[0], (k, k, in_channels, out_channels), jnp.float32),
        "upconv_b": 0.05 * jax.random.normal(ks[1], (out_channels,), jnp.float32),
        "convE1_w": kaiming(ks[2], out_channels, in_channels),
        "convE1_b": 0.05 * jax.random.normal(ks[3], (out_channels,), jnp.float32),
        "convE2_w": kaiming(ks[4], out_channels, out_channels),
        "convE2_b": 0.05 * jax.random.normal(ks[5], (out_channels,), jnp.float32),
        "bnE1_scale": bn1_scale, "bnE1_shift": bn1_shift,
        "bnE2_scale": bn2_scale, "bnE2_shift": bn2_shift,
    }


# -----------------------------------------------------------------------------
if __name__ == "__main__":
    key = jax.random.PRNGKey(0)
    k_p, k_x, k_c = jax.random.split(key, 3)

    batch, in_channels, kernel_size, drop_rate = 2, 8, 3, 0.3
    out_channels = in_channels // 2
    n_mels, n_frames = 16, 16

    params = make_params(k_p, in_channels, kernel_size)

    # x: [B, Cin, n_mels//2, n_frames//2]; x_cat: [B, Cin//2, n_mels, n_frames]
    x = jax.random.normal(k_x, (batch, in_channels, n_mels // 2, n_frames // 2),
                          jnp.float32)
    x_cat = jax.random.normal(k_c, (batch, out_channels, n_mels, n_frames),
                              jnp.float32)

    out = jax.jit(functools.partial(expanding_block_forward, params=params))(x, x_cat)
    out = jax.block_until_ready(out)

    ref = _ref_forward(x, x_cat, params)
    assert out.shape == (batch, out_channels, n_mels, n_frames), out.shape
    assert jnp.all(jnp.isfinite(out))
    max_err = float(jnp.max(jnp.abs(out - ref)))
    assert jnp.allclose(out, ref, rtol=1e-4, atol=1e-4), max_err

    print("KERNEL_OK")
</pallas_src>

<mosaic_0001>
module attributes {stable_mosaic.version = 11 : i64} {
  func.func @kernel(%arg0: i32, %arg1: memref<1x8x64xf32, #tpu.memory_space<vmem>>, %arg2: memref<1x4x324xf32, #tpu.memory_space<vmem>>, %arg3: memref<64x324xf32, #tpu.memory_space<vmem>>, %arg4: memref<1x324xf32, #tpu.memory_space<vmem>>, %arg5: memref<1x324xf32, #tpu.memory_space<vmem>>, %arg6: memref<4x72xf32, #tpu.memory_space<vmem>>, %arg7: memref<4x1xf32, #tpu.memory_space<vmem>>, %arg8: memref<4x72xf32, #tpu.memory_space<vmem>>, %arg9: memref<4x1xf32, #tpu.memory_space<vmem>>, %arg10: memref<4x36xf32, #tpu.memory_space<vmem>>, %arg11: memref<4x1xf32, #tpu.memory_space<vmem>>, %arg12: memref<1x4x324xf32, #tpu.memory_space<vmem>>) attributes {dimension_semantics = [#tpu.dimension_semantics<parallel>], iteration_bounds = array<i64: 2>, scalar_prefetch = 0 : i64, scratch_operands = 0 : i64, tpu.core_type = #tpu.core_type<tc>, window_params = [{transform_indices = @transform_0, window_bounds = array<i64: 1, 8, 64>}, {transform_indices = @transform_1, window_bounds = array<i64: 1, 4, 324>}, {pipeline_mode = #tpu.pipeline_mode<synchronous>, transform_indices = @transform_2, window_bounds = array<i64: 64, 324>}, {pipeline_mode = #tpu.pipeline_mode<synchronous>, transform_indices = @transform_3, window_bounds = array<i64: 1, 324>}, {pipeline_mode = #tpu.pipeline_mode<synchronous>, transform_indices = @transform_4, window_bounds = array<i64: 1, 324>}, {pipeline_mode = #tpu.pipeline_mode<synchronous>, transform_indices = @transform_5, window_bounds = array<i64: 4, 72>}, {pipeline_mode = #tpu.pipeline_mode<synchronous>, transform_indices = @transform_6, window_bounds = array<i64: 4, 1>}, {pipeline_mode = #tpu.pipeline_mode<synchronous>, transform_indices = @transform_7, window_bounds = array<i64: 4, 72>}, {pipeline_mode = #tpu.pipeline_mode<synchronous>, transform_indices = @transform_8, window_bounds = array<i64: 4, 1>}, {pipeline_mode = #tpu.pipeline_mode<synchronous>, transform_indices = @transform_9, window_bounds = array<i64: 4, 36>}, {pipeline_mode = #tpu.pipeline_mode<synchronous>, transform_indices = @transform_10, window_bounds = array<i64: 4, 1>}, {transform_indices = @transform_11, window_bounds = array<i64: 1, 4, 324>}]} {
    %c0 = arith.constant 0 : index
    %c0_0 = arith.constant 0 : index
    %c0_1 = arith.constant 0 : index
    %0 = vector.load %arg1[%c0, %c0_0, %c0_1] : memref<1x8x64xf32, #tpu.memory_space<vmem>>, vector<1x8x64xf32>
    %1 = vector.shape_cast %0 : vector<1x8x64xf32> to vector<8x64xf32>
    %c0_2 = arith.constant 0 : index
    %c0_3 = arith.constant 0 : index
    %2 = vector.load %arg3[%c0_2, %c0_3] : memref<64x324xf32, #tpu.memory_space<vmem>>, vector<64x324xf32>
    %cst = arith.constant dense<0.000000e+00> : vector<8x324xf32>
    %3 = tpu.matmul %1, %2, %cst {dimension_numbers = #tpu.dot_dimension_numbers<[1], [0], [0], [1], [0, 0, 1, 1], [], []>} : vector<8x64xf32>, vector<64x324xf32>, vector<8x324xf32> -> vector<8x324xf32>
    %cst_4 = arith.constant 0.000000e+00 : f32
    %4 = vector.broadcast %cst_4 : f32 to vector<8x19xf32>
    %5 = tpu.concatenate %4, %3, %4 in 1 : vector<8x19xf32>, vector<8x324xf32>, vector<8x19xf32> -> vector<8x362xf32>
    %6 = vector.extract_strided_slice %5 {offsets = [0, 0], sizes = [8, 324], strides = [1, 1]} : vector<8x362xf32> to vector<8x324xf32>
    %7 = vector.extract_strided_slice %5 {offsets = [0, 1], sizes = [8, 324], strides = [1, 1]} : vector<8x362xf32> to vector<8x324xf32>
    %8 = vector.extract_strided_slice %5 {offsets = [0, 2], sizes = [8, 324], strides = [1, 1]} : vector<8x362xf32> to vector<8x324xf32>
    %9 = vector.extract_strided_slice %5 {offsets = [0, 18], sizes = [8, 324], strides = [1, 1]} : vector<8x362xf32> to vector<8x324xf32>
    %10 = vector.extract_strided_slice %5 {offsets = [0, 19], sizes = [8, 324], strides = [1, 1]} : vector<8x362xf32> to vector<8x324xf32>
    %11 = vector.extract_strided_slice %5 {offsets = [0, 20], sizes = [8, 324], strides = [1, 1]} : vector<8x362xf32> to vector<8x324xf32>
    %12 = vector.extract_strided_slice %5 {offsets = [0, 36], sizes = [8, 324], strides = [1, 1]} : vector<8x362xf32> to vector<8x324xf32>
    %13 = vector.extract_strided_slice %5 {offsets = [0, 37], sizes = [8, 324], strides = [1, 1]} : vector<8x362xf32> to vector<8x324xf32>
    %14 = vector.extract_strided_slice %5 {offsets = [0, 38], sizes = [8, 324], strides = [1, 1]} : vector<8x362xf32> to vector<8x324xf32>
    %15 = tpu.concatenate %6, %7, %8, %9, %10, %11, %12, %13, %14 in 0 : vector<8x324xf32>, vector<8x324xf32>, vector<8x324xf32>, vector<8x324xf32>, vector<8x324xf32>, vector<8x324xf32>, vector<8x324xf32>, vector<8x324xf32>, vector<8x324xf32> -> vector<72x324xf32>
    %c0_5 = arith.constant 0 : index
    %c0_6 = arith.constant 0 : index
    %16 = vector.load %arg6[%c0_5, %c0_6] : memref<4x72xf32, #tpu.memory_space<vmem>>, vector<4x72xf32>
    %cst_7 = arith.constant dense<0.000000e+00> : vector<4x324xf32>
    %17 = tpu.matmul %16, %15, %cst_7 {dimension_numbers = #tpu.dot_dimension_numbers<[1], [0], [0], [1], [0, 0, 1, 1], [], []>} : vector<4x72xf32>, vector<72x324xf32>, vector<4x324xf32> -> vector<4x324xf32>
    %c0_8 = arith.constant 0 : index
    %c0_9 = arith.constant 0 : index
    %18 = vector.load %arg7[%c0_8, %c0_9] : memref<4x1xf32, #tpu.memory_space<vmem>>, vector<4x1xf32>
    %19 = vector.broadcast %18 : vector<4x1xf32> to vector<4x324xf32>
    %20 = arith.addf %17, %19 : vector<4x324xf32>
    %c0_10 = arith.constant 0 : index
    %c0_11 = arith.constant 0 : index
    %21 = vector.load %arg4[%c0_10, %c0_11] : memref<1x324xf32, #tpu.memory_space<vmem>>, vector<1x324xf32>
    %22 = vector.broadcast %21 : vector<1x324xf32> to vector<4x324xf32>
    %23 = arith.mulf %20, %22 : vector<4x324xf32>
    %c0_12 = arith.constant 0 : index
    %c0_13 = arith.constant 0 : index
    %c0_14 = arith.constant 0 : index
    %24 = vector.load %arg2[%c0_12, %c0_13, %c0_14] : memref<1x4x324xf32, #tpu.memory_space<vmem>>, vector<1x4x324xf32>
    %25 = vector.shape_cast %24 : vector<1x4x324xf32> to vector<4x324xf32>
    %26 = tpu.concatenate %23, %25 in 0 : vector<4x324xf32>, vector<4x324xf32> -> vector<8x324xf32>
    %cst_15 = arith.constant 0.000000e+00 : f32
    %27 = vector.broadcast %cst_15 : f32 to vector<8x19xf32>
    %28 = tpu.concatenate %27, %26, %27 in 1 : vector<8x19xf32>, vector<8x324xf32>, vector<8x19xf32> -> vector<8x362xf32>
    %29 = vector.extract_strided_slice %28 {offsets = [0, 0], sizes = [8, 324], strides = [1, 1]} : vector<8x362xf32> to vector<8x324xf32>
    %30 = vector.extract_strided_slice %28 {offsets = [0, 1], sizes = [8, 324], strides = [1, 1]} : vector<8x362xf32> to vector<8x324xf32>
    %31 = vector.extract_strided_slice %28 {offsets = [0, 2], sizes = [8, 324], strides = [1, 1]} : vector<8x362xf32> to vector<8x324xf32>
    %32 = vector.extract_strided_slice %28 {offsets = [0, 18], sizes = [8, 324], strides = [1, 1]} : vector<8x362xf32> to vector<8x324xf32>
    %33 = vector.extract_strided_slice %28 {offsets = [0, 19], sizes = [8, 324], strides = [1, 1]} : vector<8x362xf32> to vector<8x324xf32>
    %34 = vector.extract_strided_slice %28 {offsets = [0, 20], sizes = [8, 324], strides = [1, 1]} : vector<8x362xf32> to vector<8x324xf32>
    %35 = vector.extract_strided_slice %28 {offsets = [0, 36], sizes = [8, 324], strides = [1, 1]} : vector<8x362xf32> to vector<8x324xf32>
    %36 = vector.extract_strided_slice %28 {offsets = [0, 37], sizes = [8, 324], strides = [1, 1]} : vector<8x362xf32> to vector<8x324xf32>
    %37 = vector.extract_strided_slice %28 {offsets = [0, 38], sizes = [8, 324], strides = [1, 1]} : vector<8x362xf32> to vector<8x324xf32>
    %38 = tpu.concatenate %29, %30, %31, %32, %33, %34, %35, %36, %37 in 0 : vector<8x324xf32>, vector<8x324xf32>, vector<8x324xf32>, vector<8x324xf32>, vector<8x324xf32>, vector<8x324xf32>, vector<8x324xf32>, vector<8x324xf32>, vector<8x324xf32> -> vector<72x324xf32>
    %c0_16 = arith.constant 0 : index
    %c0_17 = arith.constant 0 : index
    %39 = vector.load %arg8[%c0_16, %c0_17] : memref<4x72xf32, #tpu.memory_space<vmem>>, vector<4x72xf32>
    %cst_18 = arith.constant dense<0.000000e+00> : vector<4x324xf32>
    %40 = tpu.matmul %39, %38, %cst_18 {dimension_numbers = #tpu.dot_dimension_numbers<[1], [0], [0], [1], [0, 0, 1, 1], [], []>} : vector<4x72xf32>, vector<72x324xf32>, vector<4x324xf32> -> vector<4x324xf32>
    %c0_19 = arith.constant 0 : index
    %c0_20 = arith.constant 0 : index
    %41 = vector.load %arg9[%c0_19, %c0_20] : memref<4x1xf32, #tpu.memory_space<vmem>>, vector<4x1xf32>
    %42 = vector.broadcast %41 : vector<4x1xf32> to vector<4x324xf32>
    %43 = arith.addf %40, %42 : vector<4x324xf32>
    %cst_21 = arith.constant 0.000000e+00 : f32
    %44 = vector.broadcast %cst_21 : f32 to vector<4x324xf32>
    %45 = arith.maximumf %43, %44 : vector<4x324xf32>
    %c0_22 = arith.constant 0 : index
    %c0_23 = arith.constant 0 : index
    %46 = vector.load %arg5[%c0_22, %c0_23] : memref<1x324xf32, #tpu.memory_space<vmem>>, vector<1x324xf32>
    %47 = vector.broadcast %46 : vector<1x324xf32> to vector<4x324xf32>
    %48 = arith.mulf %45, %47 : vector<4x324xf32>
    %cst_24 = arith.constant 0.000000e+00 : f32
    %49 = vector.broadcast %cst_24 : f32 to vector<4x19xf32>
    %50 = tpu.concatenate %49, %48, %49 in 1 : vector<4x19xf32>, vector<4x324xf32>, vector<4x19xf32> -> vector<4x362xf32>
    %51 = vector.extract_strided_slice %50 {offsets = [0, 0], sizes = [4, 324], strides = [1, 1]} : vector<4x362xf32> to vector<4x324xf32>
    %52 = vector.extract_strided_slice %50 {offsets = [0, 1], sizes = [4, 324], strides = [1, 1]} : vector<4x362xf32> to vector<4x324xf32>
    %53 = vector.extract_strided_slice %50 {offsets = [0, 2], sizes = [4, 324], strides = [1, 1]} : vector<4x362xf32> to vector<4x324xf32>
    %54 = vector.extract_strided_slice %50 {offsets = [0, 18], sizes = [4, 324], strides = [1, 1]} : vector<4x362xf32> to vector<4x324xf32>
    %55 = vector.extract_strided_slice %50 {offsets = [0, 19], sizes = [4, 324], strides = [1, 1]} : vector<4x362xf32> to vector<4x324xf32>
    %56 = vector.extract_strided_slice %50 {offsets = [0, 20], sizes = [4, 324], strides = [1, 1]} : vector<4x362xf32> to vector<4x324xf32>
    %57 = vector.extract_strided_slice %50 {offsets = [0, 36], sizes = [4, 324], strides = [1, 1]} : vector<4x362xf32> to vector<4x324xf32>
    %58 = vector.extract_strided_slice %50 {offsets = [0, 37], sizes = [4, 324], strides = [1, 1]} : vector<4x362xf32> to vector<4x324xf32>
    %59 = vector.extract_strided_slice %50 {offsets = [0, 38], sizes = [4, 324], strides = [1, 1]} : vector<4x362xf32> to vector<4x324xf32>
    %60 = tpu.concatenate %51, %52, %53, %54, %55, %56, %57, %58, %59 in 0 : vector<4x324xf32>, vector<4x324xf32>, vector<4x324xf32>, vector<4x324xf32>, vector<4x324xf32>, vector<4x324xf32>, vector<4x324xf32>, vector<4x324xf32>, vector<4x324xf32> -> vector<36x324xf32>
    %c0_25 = arith.constant 0 : index
    %c0_26 = arith.constant 0 : index
    %61 = vector.load %arg10[%c0_25, %c0_26] : memref<4x36xf32, #tpu.memory_space<vmem>>, vector<4x36xf32>
    %cst_27 = arith.constant dense<0.000000e+00> : vector<4x324xf32>
    %62 = tpu.matmul %61, %60, %cst_27 {dimension_numbers = #tpu.dot_dimension_numbers<[1], [0], [0], [1], [0, 0, 1, 1], [], []>} : vector<4x36xf32>, vector<36x324xf32>, vector<4x324xf32> -> vector<4x324xf32>
    %c0_28 = arith.constant 0 : index
    %c0_29 = arith.constant 0 : index
    %63 = vector.load %arg11[%c0_28, %c0_29] : memref<4x1xf32, #tpu.memory_space<vmem>>, vector<4x1xf32>
    %64 = vector.broadcast %63 : vector<4x1xf32> to vector<4x324xf32>
    %65 = arith.addf %62, %64 : vector<4x324xf32>
    %cst_30 = arith.constant 0.000000e+00 : f32
    %66 = vector.broadcast %cst_30 : f32 to vector<4x324xf32>
    %67 = arith.maximumf %65, %66 : vector<4x324xf32>
    %c0_31 = arith.constant 0 : index
    %c0_32 = arith.constant 0 : index
    %c0_33 = arith.constant 0 : index
    %68 = vector.load %arg12[%c0_31, %c0_32, %c0_33] : memref<1x4x324xf32, #tpu.memory_space<vmem>>, vector<1x4x324xf32>
    %69 = vector.shape_cast %68 : vector<1x4x324xf32> to vector<4x324xf32>
    %70 = vector.shape_cast %67 : vector<4x324xf32> to vector<1x4x324xf32>
    tpu.vector_store %arg12[%c0_31, %c0_32, %c0_33], %70 {strides = array<i32>} : memref<1x4x324xf32, #tpu.memory_space<vmem>>, vector<1x4x324xf32>,
    return
  }
  func.func @transform_0(%arg0: i32) -> (i32, i32, i32) {
    %c0_i32 = arith.constant 0 : i32
    %c0_i32_0 = arith.constant 0 : i32
    %c0_i32_1 = arith.constant 0 : i32
    return %arg0, %c0_i32, %c0_i32_0 : i32, i32, i32
  }
  func.func @transform_1(%arg0: i32) -> (i32, i32, i32) {
    %c0_i32 = arith.constant 0 : i32
    %c0_i32_0 = arith.constant 0 : i32
    %c0_i32_1 = arith.constant 0 : i32
    return %arg0, %c0_i32, %c0_i32_0 : i32, i32, i32
  }
  func.func @transform_2(%arg0: i32) -> (i32, i32) {
    %c0_i32 = arith.constant 0 : i32
    %c0_i32_0 = arith.constant 0 : i32
    %c0_i32_1 = arith.constant 0 : i32
    return %c0_i32, %c0_i32_0 : i32, i32
  }
  func.func @transform_3(%arg0: i32) -> (i32, i32) {
    %c0_i32 = arith.constant 0 : i32
    %c0_i32_0 = arith.constant 0 : i32
    %c0_i32_1 = arith.constant 0 : i32
    return %c0_i32, %c0_i32_0 : i32, i32
  }
  func.func @transform_4(%arg0: i32) -> (i32, i32) {
    %c0_i32 = arith.constant 0 : i32
    %c0_i32_0 = arith.constant 0 : i32
    %c0_i32_1 = arith.constant 0 : i32
    return %c0_i32, %c0_i32_0 : i32, i32
  }
  func.func @transform_5(%arg0: i32) -> (i32, i32) {
    %c0_i32 = arith.constant 0 : i32
    %c0_i32_0 = arith.constant 0 : i32
    %c0_i32_1 = arith.constant 0 : i32
    return %c0_i32, %c0_i32_0 : i32, i32
  }
  func.func @transform_6(%arg0: i32) -> (i32, i32) {
    %c0_i32 = arith.constant 0 : i32
    %c0_i32_0 = arith.constant 0 : i32
    %c0_i32_1 = arith.constant 0 : i32
    return %c0_i32, %c0_i32_0 : i32, i32
  }
  func.func @transform_7(%arg0: i32) -> (i32, i32) {
    %c0_i32 = arith.constant 0 : i32
    %c0_i32_0 = arith.constant 0 : i32
    %c0_i32_1 = arith.constant 0 : i32
    return %c0_i32, %c0_i32_0 : i32, i32
  }
  func.func @transform_8(%arg0: i32) -> (i32, i32) {
    %c0_i32 = arith.constant 0 : i32
    %c0_i32_0 = arith.constant 0 : i32
    %c0_i32_1 = arith.constant 0 : i32
    return %c0_i32, %c0_i32_0 : i32, i32
  }
  func.func @transform_9(%arg0: i32) -> (i32, i32) {
    %c0_i32 = arith.constant 0 : i32
    %c0_i32_0 = arith.constant 0 : i32
    %c0_i32_1 = arith.constant 0 : i32
    return %c0_i32, %c0_i32_0 : i32, i32
  }
  func.func @transform_10(%arg0: i32) -> (i32, i32) {
    %c0_i32 = arith.constant 0 : i32
    %c0_i32_0 = arith.constant 0 : i32
    %c0_i32_1 = arith.constant 0 : i32
    return %c0_i32, %c0_i32_0 : i32, i32
  }
  func.func @transform_11(%arg0: i32) -> (i32, i32, i32) {
    %c0_i32 = arith.constant 0 : i32
    %c0_i32_0 = arith.constant 0 : i32
    %c0_i32_1 = arith.constant 0 : i32
    return %arg0, %c0_i32, %c0_i32_0 : i32, i32, i32
  }
}

</mosaic_0001>

<llo_original>
// kernel: expanding_block_forward.1
$region0: #{expanding_block_forward.1}
  #allocation0 [shape = 'u32[]', space=smem, size = 0x4, offset = 0x4, fixed_abs, tag = 'smem constant byte address 0x4 - core index']
  #allocation1 [shape = 'u32[72,128]{1,0:T(1,128)}', space=vmem, size = 0x9000, scoped, tag = 'internal scratch']
  %s0 = inlined_call_operand.vmem [shape: f32[2,8,64], index: 0, kind: input, shape index: {}]
  %s1 = inlined_call_operand.vmem [shape: f32[2,4,324], index: 1, kind: input, shape index: {}]
  %s2 = inlined_call_operand.vmem [shape: f32[64,324], index: 2, kind: input, shape index: {}]
  %s3 = inlined_call_operand.vmem [shape: f32[1,324], index: 3, kind: input, shape index: {}, may-alias: {3,4}]
  %s4 = inlined_call_operand.vmem [shape: f32[1,324], index: 4, kind: input, shape index: {}, may-alias: {3,4}]
  %s5 = inlined_call_operand.vmem [shape: f32[4,72], index: 5, kind: input, shape index: {}]
  %s6 = inlined_call_operand.vmem [shape: f32[4,1], index: 6, kind: input, shape index: {}]
  %s7 = inlined_call_operand.vmem [shape: f32[4,72], index: 7, kind: input, shape index: {}]
  %s8 = inlined_call_operand.vmem [shape: f32[4,1], index: 8, kind: input, shape index: {}]
  %s9 = inlined_call_operand.vmem [shape: f32[4,36], index: 9, kind: input, shape index: {}]
  %s10 = inlined_call_operand.vmem [shape: f32[4,1], index: 10, kind: input, shape index: {}]
  %s11 = inlined_call_operand.vmem [shape: f32[2,4,324], index: 11, kind: output, shape index: {}]
  %s12 = sld [smem:[#allocation0]]
  $region77: #{expanding_block_forward.1} parent=0
    _
  %s14 = ssub.s32 1, %s12
  %s15 = scalar_select 0, %s14, %s12
  loop: start=0, step=1, limit=4
  $region2: #{expanding_block_forward.1} parent=0 // loop_pre_header
    _
  $region3: #{expanding_block_forward.1} parent=0 // loop_header
    %s17 = sphi 0, %s21
    %p18 = scmp.ge.s32.totalorder %s17, 4
    %s27 = sphi 0, %s29
    %s30 = sphi 0, %s27
    %s31 = sphi 0, %s30
    %s47 = sphi 0, %s31
    %s53 = sphi 0, %s55
    %s56 = sphi 0, %s53
    %s57 = sphi 0, %s56
    %s73 = sphi 0, %s57
    %s77 = sphi 0, %s77
    %s79 = sphi 0, %s77
    %s80 = sphi 0, %s79
    %s94 = sphi 0, %s80
    %s98 = sphi 0, %s98
    %s100 = sphi 0, %s98
    %s101 = sphi 0, %s100
    %s115 = sphi 0, %s101
    %s119 = sphi 0, %s119
    %s121 = sphi 0, %s119
    %s122 = sphi 0, %s121
    %s136 = sphi 0, %s122
    %s140 = sphi 0, %s140
    %s142 = sphi 0, %s140
    %s143 = sphi 0, %s142
    %s157 = sphi 0, %s143
    %s161 = sphi 0, %s161
    %s163 = sphi 0, %s161
    %s164 = sphi 0, %s163
    %s178 = sphi 0, %s164
    %s182 = sphi 0, %s182
    %s184 = sphi 0, %s182
    %s185 = sphi 0, %s184
    %s199 = sphi 0, %s185
    %s203 = sphi 0, %s203
    %s205 = sphi 0, %s203
    %s206 = sphi 0, %s205
    %s220 = sphi 0, %s206
    %s224 = sphi 0, %s224
    %s226 = sphi 0, %s224
    %s227 = sphi 0, %s226
    %s241 = sphi 0, %s227
    %s245 = sphi 0, %s245
    %s247 = sphi 0, %s245
    %s248 = sphi 0, %s247
    %s262 = sphi 0, %s248
    %s268 = sphi 0, %s270
    %s271 = sphi 0, %s268
    %s272 = sphi 0, %s271
    %s288 = sphi 0, %s272
  $region4: #{expanding_block_forward.1} parent=0 // loop_header_branch
    %20 = sbr.rel (%p18) target = $region8
  $region5: #{expanding_block_forward.1} parent=0 // loop_body
    %s22 = ssub.s32 %s17, 1
    %s23 = ssub.s32 %s17, 2
    %s24 = sadd.s32 %s17, 1
    %s25 = ssub.s32 %s17, %s24
    %p26 = scmp.eq.s32.totalorder %s25, 0
    %s28 = sadd.s32 %s27, 1
    %s29 = scalar_select %p26, %s27, %s28
    %p32 = pneg %p26
    %p33 = scmp.eq.s32.totalorder %s17, 1
    %p34 = por %p32, %p33
    %p35 = scmp.ne.s32.totalorder %s27, %s30
    %p36 = scmp.eq.s32.totalorder %s17, 0
    %p37 = por %p35, %p36
    %p38 = scmp.ne.s32.totalorder %s27, %s30
    %p39 = scmp.eq.s32.totalorder %s22, 1
    %p40 = por %p38, %p39
    %p41 = scmp.ne.s32.totalorder %s30, %s31
    %p42 = scmp.eq.s32.totalorder %s22, 0
    %p43 = por %p41, %p42
    %p44 = scmp.ne.s32.totalorder %s30, %s31
    %p45 = scmp.eq.s32.totalorder %s23, 1
    %p46 = por %p44, %p45
    %p48 = scmp.ne.s32.totalorder %s31, %s47
    %p49 = scmp.eq.s32.totalorder %s23, 0
    %p50 = por %p48, %p49
    %s51 = ssub.s32 %s17, %s24
    %p52 = scmp.eq.s32.totalorder %s51, 0
    %s54 = sadd.s32 %s53, 1
    %s55 = scalar_select %p52, %s53, %s54
    %p58 = pneg %p52
    %p59 = scmp.eq.s32.totalorder %s17, 1
    %p60 = por %p58, %p59
    %p61 = scmp.ne.s32.totalorder %s53, %s56
    %p62 = scmp.eq.s32.totalorder %s17, 0
    %p63 = por %p61, %p62
    %p64 = scmp.ne.s32.totalorder %s53, %s56
    %p65 = scmp.eq.s32.totalorder %s22, 1
    %p66 = por %p64, %p65
    %p67 = scmp.ne.s32.totalorder %s56, %s57
    %p68 = scmp.eq.s32.totalorder %s22, 0
    %p69 = por %p67, %p68
    %p70 = scmp.ne.s32.totalorder %s56, %s57
    %p71 = scmp.eq.s32.totalorder %s23, 1
    %p72 = por %p70, %p71
    %p74 = scmp.ne.s32.totalorder %s57, %s73
    %p75 = scmp.eq.s32.totalorder %s23, 0
    %p76 = por %p74, %p75
    %s78 = sadd.s32 %s77, 1
    %p81 = scmp.eq.s32.totalorder %s17, 1
    %p82 = scmp.ne.s32.totalorder %s77, %s79
    %p83 = scmp.eq.s32.totalorder %s17, 0
    %p84 = por %p82, %p83
    %p85 = scmp.ne.s32.totalorder %s77, %s79
    %p86 = scmp.eq.s32.totalorder %s22, 1
    %p87 = por %p85, %p86
    %p88 = scmp.ne.s32.totalorder %s79, %s80
    %p89 = scmp.eq.s32.totalorder %s22, 0
    %p90 = por %p88, %p89
    %p91 = scmp.ne.s32.totalorder %s79, %s80
    %p92 = scmp.eq.s32.totalorder %s23, 1
    %p93 = por %p91, %p92
    %p95 = scmp.ne.s32.totalorder %s80, %s94
    %p96 = scmp.eq.s32.totalorder %s23, 0
    %p97 = por %p95, %p96
    %s99 = sadd.s32 %s98, 1
    %p102 = scmp.eq.s32.totalorder %s17, 1
    %p103 = scmp.ne.s32.totalorder %s98, %s100
    %p104 = scmp.eq.s32.totalorder %s17, 0
    %p105 = por %p103, %p104
    %p106 = scmp.ne.s32.totalorder %s98, %s100
    %p107 = scmp.eq.s32.totalorder %s22, 1
    %p108 = por %p106, %p107
    %p109 = scmp.ne.s32.totalorder %s100, %s101
    %p110 = scmp.eq.s32.totalorder %s22, 0
    %p111 = por %p109, %p110
    %p112 = scmp.ne.s32.totalorder %s100, %s101
    %p113 = scmp.eq.s32.totalorder %s23, 1
    %p114 = por %p112, %p113
    %p116 = scmp.ne.s32.totalorder %s101, %s115
    %p117 = scmp.eq.s32.totalorder %s23, 0
    %p118 = por %p116, %p117
    %s120 = sadd.s32 %s119, 1
    %p123 = scmp.eq.s32.totalorder %s17, 1
    %p124 = scmp.ne.s32.totalorder %s119, %s121
    %p125 = scmp.eq.s32.totalorder %s17, 0
    %p126 = por %p124, %p125
    %p127 = scmp.ne.s32.totalorder %s119, %s121
    %p128 = scmp.eq.s32.totalorder %s22, 1
    %p129 = por %p127, %p128
    %p130 = scmp.ne.s32.totalorder %s121, %s122
    %p131 = scmp.eq.s32.totalorder %s22, 0
    %p132 = por %p130, %p131
    %p133 = scmp.ne.s32.totalorder %s121, %s122
    %p134 = scmp.eq.s32.totalorder %s23, 1
    %p135 = por %p133, %p134
    %p137 = scmp.ne.s32.totalorder %s122, %s136
    %p138 = scmp.eq.s32.totalorder %s23, 0
    %p139 = por %p137, %p138
    %s141 = sadd.s32 %s140, 1
    %p144 = scmp.eq.s32.totalorder %s17, 1
    %p145 = scmp.ne.s32.totalorder %s140, %s142
    %p146 = scmp.eq.s32.totalorder %s17, 0
    %p147 = por %p145, %p146
    %p148 = scmp.ne.s32.totalorder %s140, %s142
    %p149 = scmp.eq.s32.totalorder %s22, 1
    %p150 = por %p148, %p149
    %p151 = scmp.ne.s32.totalorder %s142, %s143
    %p152 = scmp.eq.s32.totalorder %s22, 0
    %p153 = por %p151, %p152
    %p154 = scmp.ne.s32.totalorder %s142, %s143
    %p155 = scmp.eq.s32.totalorder %s23, 1
    %p156 = por %p154, %p155
    %p158 = scmp.ne.s32.totalorder %s143, %s157
    %p159 = scmp.eq.s32.totalorder %s23, 0
    %p160 = por %p158, %p159
    %s162 = sadd.s32 %s161, 1
    %p165 = scmp.eq.s32.totalorder %s17, 1
    %p166 = scmp.ne.s32.totalorder %s161, %s163
    %p167 = scmp.eq.s32.totalorder %s17, 0
    %p168 = por %p166, %p167
    %p169 = scmp.ne.s32.totalorder %s161, %s163
    %p170 = scmp.eq.s32.totalorder %s22, 1
    %p171 = por %p169, %p170
    %p172 = scmp.ne.s32.totalorder %s163, %s164
    %p173 = scmp.eq.s32.totalorder %s22, 0
    %p174 = por %p172, %p173
    %p175 = scmp.ne.s32.totalorder %s163, %s164
    %p176 = scmp.eq.s32.totalorder %s23, 1
    %p177 = por %p175, %p176
    %p179 = scmp.ne.s32.totalorder %s164, %s178
    %p180 = scmp.eq.s32.totalorder %s23, 0
    %p181 = por %p179, %p180
    %s183 = sadd.s32 %s182, 1
    %p186 = scmp.eq.s32.totalorder %s17, 1
    %p187 = scmp.ne.s32.totalorder %s182, %s184
    %p188 = scmp.eq.s32.totalorder %s17, 0
    %p189 = por %p187, %p188
    %p190 = scmp.ne.s32.totalorder %s182, %s184
    %p191 = scmp.eq.s32.totalorder %s22, 1
    %p192 = por %p190, %p191
    %p193 = scmp.ne.s32.totalorder %s184, %s185
    %p194 = scmp.eq.s32.totalorder %s22, 0
    %p195 = por %p193, %p194
    %p196 = scmp.ne.s32.totalorder %s184, %s185
    %p197 = scmp.eq.s32.totalorder %s23, 1
    %p198 = por %p196, %p197
    %p200 = scmp.ne.s32.totalorder %s185, %s199
    %p201 = scmp.eq.s32.totalorder %s23, 0
    %p202 = por %p200, %p201
    %s204 = sadd.s32 %s203, 1
    %p207 = scmp.eq.s32.totalorder %s17, 1
    %p208 = scmp.ne.s32.totalorder %s203, %s205
    %p209 = scmp.eq.s32.totalorder %s17, 0
    %p210 = por %p208, %p209
    %p211 = scmp.ne.s32.totalorder %s203, %s205
    %p212 = scmp.eq.s32.totalorder %s22, 1
    %p213 = por %p211, %p212
    %p214 = scmp.ne.s32.totalorder %s205, %s206
    %p215 = scmp.eq.s32.totalorder %s22, 0
    %p216 = por %p214, %p215
    %p217 = scmp.ne.s32.totalorder %s205, %s206
    %p218 = scmp.eq.s32.totalorder %s23, 1
    %p219 = por %p217, %p218
    %p221 = scmp.ne.s32.totalorder %s206, %s220
    %p222 = scmp.eq.s32.totalorder %s23, 0
    %p223 = por %p221, %p222
    %s225 = sadd.s32 %s224, 1
    %p228 = scmp.eq.s32.totalorder %s17, 1
    %p229 = scmp.ne.s32.totalorder %s224, %s226
    %p230 = scmp.eq.s32.totalorder %s17, 0
    %p231 = por %p229, %p230
    %p232 = scmp.ne.s32.totalorder %s224, %s226
    %p233 = scmp.eq.s32.totalorder %s22, 1
    %p234 = por %p232, %p233
    %p235 = scmp.ne.s32.totalorder %s226, %s227
    %p236 = scmp.eq.s32.totalorder %s22, 0
    %p237 = por %p235, %p236
    %p238 = scmp.ne.s32.totalorder %s226, %s227
    %p239 = scmp.eq.s32.totalorder %s23, 1
    %p240 = por %p238, %p239
    %p242 = scmp.ne.s32.totalorder %s227, %s241
    %p243 = scmp.eq.s32.totalorder %s23, 0
    %p244 = por %p242, %p243
    %s246 = sadd.s32 %s245, 1
    %p249 = scmp.eq.s32.totalorder %s17, 1
    %p250 = scmp.ne.s32.totalorder %s245, %s247
    %p251 = scmp.eq.s32.totalorder %s17, 0
    %p252 = por %p250, %p251
    %p253 = scmp.ne.s32.totalorder %s245, %s247
    %p254 = scmp.eq.s32.totalorder %s22, 1
    %p255 = por %p253, %p254
    %p256 = scmp.ne.s32.totalorder %s247, %s248
    %p257 = scmp.eq.s32.totalorder %s22, 0
    %p258 = por %p256, %p257
    %p259 = scmp.ne.s32.totalorder %s247, %s248
    %p260 = scmp.eq.s32.totalorder %s23, 1
    %p261 = por %p259, %p260
    %p263 = scmp.ne.s32.totalorder %s248, %s262
    %p264 = scmp.eq.s32.totalorder %s23, 0
    %p265 = por %p263, %p264
    %s266 = ssub.s32 %s17, %s24
    %p267 = scmp.eq.s32.totalorder %s266, 0
    %s269 = sadd.s32 %s268, 1
    %s270 = scalar_select %p267, %s268, %s269
    %p273 = pneg %p267
    %p274 = scmp.eq.s32.totalorder %s17, 1
    %p275 = por %p273, %p274
    %p276 = scmp.ne.s32.totalorder %s268, %s271
    %p277 = scmp.eq.s32.totalorder %s17, 0
    %p278 = por %p276, %p277
    %p279 = scmp.ne.s32.totalorder %s268, %s271
    %p280 = scmp.eq.s32.totalorder %s22, 1
    %p281 = por %p279, %p280
    %p282 = scmp.ne.s32.totalorder %s271, %s272
    %p283 = scmp.eq.s32.totalorder %s22, 0
    %p284 = por %p282, %p283
    %p285 = scmp.ne.s32.totalorder %s271, %s272
    %p286 = scmp.eq.s32.totalorder %s23, 1
    %p287 = por %p285, %p286
    %p289 = scmp.ne.s32.totalorder %s272, %s288
    %p290 = scmp.eq.s32.totalorder %s23, 0
    %p291 = por %p289, %p290
    %p292 = scmp.le.s32.totalorder 1, %s17
    %p293 = scmp.lt.s32.totalorder %s17, 3
    %p294 = pnand %p292, %p293
    %p295 = pneg %p294
    // Predicated region
    $region9: #{expanding_block_forward.1} parent=5 // pred_check
      _
    $region10: #{expanding_block_forward.1} parent=5 // pred_check_branch
      %297 = sbr.rel (%p294) target = $region12
    $region11: #{expanding_block_forward.1} parent=5 // pred_region
      %s298 = ssub.s32 %s17, 1
      // Predicated region
      $region13: #{expanding_block_forward.1} parent=11 // pred_check
        %p299 = pneg %p90
      $region14: #{expanding_block_forward.1} parent=11 // pred_check_branch
        %301 = sbr.rel (%p299) target = $region16
      $region15: #{expanding_block_forward.1} parent=11 // pred_region
        _
      $region16: #{expanding_block_forward.1} parent=11 // pred_fallthru
        _
      // Predicated region
      $region17: #{expanding_block_forward.1} parent=11 // pred_check
        %p302 = pneg %p111
      $region18: #{expanding_block_forward.1} parent=11 // pred_check_branch
        %304 = sbr.rel (%p302) target = $region20
      $region19: #{expanding_block_forward.1} parent=11 // pred_region
        _
      $region20: #{expanding_block_forward.1} parent=11 // pred_fallthru
        _
      // Predicated region
      $region21: #{expanding_block_forward.1} parent=11 // pred_check
        %p305 = pneg %p132
      $region22: #{expanding_block_forward.1} parent=11 // pred_check_branch
        %307 = sbr.rel (%p305) target = $region24
      $region23: #{expanding_block_forward.1} parent=11 // pred_region
        _
      $region24: #{expanding_block_forward.1} parent=11 // pred_fallthru
        _
      // Predicated region
      $region25: #{expanding_block_forward.1} parent=11 // pred_check
        %p308 = pneg %p153
      $region26: #{expanding_block_forward.1} parent=11 // pred_check_branch
        %310 = sbr.rel (%p308) target = $region28
      $region27: #{expanding_block_forward.1} parent=11 // pred_region
        _
      $region28: #{expanding_block_forward.1} parent=11 // pred_fallthru
        _
      // Predicated region
      $region29: #{expanding_block_forward.1} parent=11 // pred_check
        %p311 = pneg %p174
      $region30: #{expanding_block_forward.1} parent=11 // pred_check_branch
        %313 = sbr.rel (%p311) target = $region32
      $region31: #{expanding_block_forward.1} parent=11 // pred_region
        _
      $region32: #{expanding_block_forward.1} parent=11 // pred_fallthru
        _
      // Predicated region
      $region33: #{expanding_block_forward.1} parent=11 // pred_check
        %p314 = pneg %p195
      $region34: #{expanding_block_forward.1} parent=11 // pred_check_branch
        %316 = sbr.rel (%p314) target = $region36
      $region35: #{expanding_block_forward.1} parent=11 // pred_region
        _
      $region36: #{expanding_block_forward.1} parent=11 // pred_fallthru
        _
      // Predicated region
      $region37: #{expanding_block_forward.1} parent=11 // pred_check
        %p317 = pneg %p216
      $region38: #{expanding_block_forward.1} parent=11 // pred_check_branch
        %319 = sbr.rel (%p317) target = $region40
      $region39: #{expanding_block_forward.1} parent=11 // pred_region
        _
      $region40: #{expanding_block_forward.1} parent=11 // pred_fallthru
        _
      // Predicated region
      $region41: #{expanding_block_forward.1} parent=11 // pred_check
        %p320 = pneg %p237
      $region42: #{expanding_block_forward.1} parent=11 // pred_check_branch
        %322 = sbr.rel (%p320) target = $region44
      $region43: #{expanding_block_forward.1} parent=11 // pred_region
        _
      $region44: #{expanding_block_forward.1} parent=11 // pred_fallthru
        _
      // Predicated region
      $region45: #{expanding_block_forward.1} parent=11 // pred_check
        %p323 = pneg %p258
      $region46: #{expanding_block_forward.1} parent=11 // pred_check_branch
        %325 = sbr.rel (%p323) target = $region48
      $region47: #{expanding_block_forward.1} parent=11 // pred_region
        _
      $region48: #{expanding_block_forward.1} parent=11 // pred_fallthru
        _
    $region12: #{expanding_block_forward.1} parent=5 // pred_fallthru
      _
    %p326 = scmp.lt.s32.totalorder %s17, 2
    // Predicated region
    $region49: #{expanding_block_forward.1} parent=5 // pred_check
      %p327 = pneg %p326
    $region50: #{expanding_block_forward.1} parent=5 // pred_check_branch
      %329 = sbr.rel (%p327) target = $region52
    $region51: #{expanding_block_forward.1} parent=5 // pred_region
      // Predicated region
      $region53: #{expanding_block_forward.1} parent=51 // pred_check
        %p330 = pneg %p37
      $region54: #{expanding_block_forward.1} parent=51 // pred_check_branch
        %332 = sbr.rel (%p330) target = $region56
      $region55: #{expanding_block_forward.1} parent=51 // pred_region
        %p333 = scmp.lt.s32.totalorder %s17, 1
        %s334 = scalar_select %p333, %s17, 1
        %s335 = smul.addr %s334, 8
        %s336 = scalar_lea.vmem %s0, %s335
      $region56: #{expanding_block_forward.1} parent=51 // pred_fallthru
        _
      // Predicated region
      $region57: #{expanding_block_forward.1} parent=51 // pred_check
        %p337 = pneg %p63
      $region58: #{expanding_block_forward.1} parent=51 // pred_check_branch
        %339 = sbr.rel (%p337) target = $region60
      $region59: #{expanding_block_forward.1} parent=51 // pred_region
        %p340 = scmp.lt.s32.totalorder %s17, 1
        %s341 = scalar_select %p340, %s17, 1
        %s342 = smul.addr %s341, 3
        %s343 = smul.addr %s342, 4
        %s344 = scalar_lea.vmem %s1, %s343
      $region60: #{expanding_block_forward.1} parent=51 // pred_fallthru
        _
    $region52: #{expanding_block_forward.1} parent=5 // pred_fallthru
      _
    %p345 = scmp.le.s32.totalorder 1, %s17
    %p346 = scmp.lt.s32.totalorder %s17, 3
    %p347 = pnand %p345, %p346
    %p348 = pneg %p347
    // Predicated region
    $region61: #{expanding_block_forward.1} parent=5 // pred_check
      _
    $region62: #{expanding_block_forward.1} parent=5 // pred_check_branch
      %350 = sbr.rel (%p347) target = $region64
    $region63: #{expanding_block_forward.1} parent=5 // pred_region
      %s351 = ssub.s32 %s17, 1
      %p352 = scmp.lt.s32.totalorder %s22, 1
      %s353 = scalar_select %p352, %s22, 1
      %s354 = smul.addr %s353, 8
      %s355 = scalar_lea.vmem %s0, %s354
      %p356 = pneg %p43
      %p357 = pneg %p40
      %p358 = scmp.lt.s32.totalorder %s22, 1
      %s359 = scalar_select %p358, %s22, 1
      %s360 = smul.addr %s359, 3
      %s361 = smul.addr %s360, 4
      %s362 = scalar_lea.vmem %s1, %s361
      %p363 = pneg %p69
      %p364 = pneg %p66
      %p365 = pneg %p90
      %p366 = pneg %p87
      %p367 = pneg %p111
      %p368 = pneg %p108
      %p369 = pneg %p132
      %p370 = pneg %p129
      %p371 = pneg %p153
      %p372 = pneg %p150
      %p373 = pneg %p174
      %p374 = pneg %p171
      %p375 = pneg %p195
      %p376 = pneg %p192
      %p377 = pneg %p216
      %p378 = pneg %p213
      %p379 = pneg %p237
      %p380 = pneg %p234
      %p381 = pneg %p258
      %p382 = pneg %p255
      %p383 = pneg %p284
      %p384 = pneg %p281
      %p385 = scmp.lt.s32.totalorder %s22, 1
      %s386 = scalar_select %p385, %s22, 1
      %s387 = smul.addr %s386, 3
      %s388 = smul.addr %s387, 4
      %s389 = scalar_lea.vmem %s11, %s388
      %p390 = scmp.lt.s32.totalorder %s22, 1
      %s391 = scalar_select %p390, %s22, 1
      %s392 = smul.addr %s391, 8
      %s393 = scalar_lea.vmem %s0, %s392
      %p394 = scmp.lt.s32.totalorder %s22, 1
      %s395 = scalar_select %p394, %s22, 1
      %s396 = smul.addr %s395, 3
      %s397 = smul.addr %s396, 4
      %s398 = scalar_lea.vmem %s1, %s397
      %p399 = scmp.lt.s32.totalorder %s22, 1
      %s400 = scalar_select %p399, %s22, 1
      %s401 = smul.addr %s400, 3
      %s402 = smul.addr %s401, 4
      %s403 = scalar_lea.vmem %s11, %s402
      %v404 = vld [vmem:[%s393] sm:$0xff]
      %v405 = vld [vmem:[%s2] sm:$0xff]
      %v406 = vld [vmem:[%s2 + $0x8] sm:$0xff]
      %v407 = vld [vmem:[%s2 + $0x10] sm:$0xff]
      %v408 = vld [vmem:[%s2 + $0x18] sm:$0xff]
      %v409 = vld [vmem:[%s2 + $0x20] sm:$0xff]
      %v410 = vld [vmem:[%s2 + $0x28] sm:$0xff]
      %v411 = vld [vmem:[%s2 + $0x30] sm:$0xff]
      %v412 = vld [vmem:[%s2 + $0x38] sm:$0xff]
      %v413 = vld [vmem:[%s2 + $0x40] sm:$0xff]
      %v414 = vld [vmem:[%s2 + $0x48] sm:$0xff]
      %v415 = vld [vmem:[%s2 + $0x50] sm:$0xff]
      %v416 = vld [vmem:[%s2 + $0x58] sm:$0xff]
      %v417 = vld [vmem:[%s2 + $0x60] sm:$0xff]
      %v418 = vld [vmem:[%s2 + $0x68] sm:$0xff]
      %v419 = vld [vmem:[%s2 + $0x70] sm:$0xff]
      %v420 = vld [vmem:[%s2 + $0x78] sm:$0xff]
      %v421 = vld [vmem:[%s2 + $0x80] sm:$0xff]
      %v422 = vld [vmem:[%s2 + $0x88] sm:$0xff]
      %v423 = vld [vmem:[%s2 + $0x90] sm:$0xff]
      %v424 = vld [vmem:[%s2 + $0x98] sm:$0xff]
      %v425 = vld [vmem:[%s2 + $0xa0] sm:$0xff]
      %v426 = vld [vmem:[%s2 + $0xa8] sm:$0xff]
      %v427 = vld [vmem:[%s2 + $0xb0] sm:$0xff]
      %v428 = vld [vmem:[%s2 + $0xb8] sm:$0xff]
      %vm429 = vcmask 523264
      %v431 = vsel %vm429, %v404, 0
      %433 = vmatpush.msra.mxu0 0.0
      %434 = vmatpush.msra.mxu0 0.0
      %435 = vmatpush.msra.mxu0 0.0
      %436 = vmatpush.msra.mxu0 0.0
      %437 = vmatpush.msra.mxu0 0.0
      %438 = vmatpush.msra.mxu0 0.0
      %439 = vmatpush.msra.mxu0 0.0
      %440 = vmatpush.msra.mxu0 0.0
      %441 = vmatpush.msra.mxu0 %v426
      %442 = vmatpush.msra.mxu0 %v423
      %443 = vmatpush.msra.mxu0 %v420
      %444 = vmatpush.msra.mxu0 %v417
      %445 = vmatpush.msra.mxu0 %v414
      %446 = vmatpush.msra.mxu0 %v411
      %447 = vmatpush.msra.mxu0 %v408
      %448 = vmatpush.msra.mxu0 %v405
      %449 = vmatmul.f32.gmra.mxu0 %v431
      %v450 = vpop.f32.mrf.mxu0
      %v451 = vadd.f32 0.0, %v450
      %452 = vdwg.mxu0
      %453 = vmatpush.msra.mxu0 0.0
      %454 = vmatpush.msra.mxu0 0.0
      %455 = vmatpush.msra.mxu0 0.0
      %456 = vmatpush.msra.mxu0 0.0
      %457 = vmatpush.msra.mxu0 0.0
      %458 = vmatpush.msra.mxu0 0.0
      %459 = vmatpush.msra.mxu0 0.0
      %460 = vmatpush.msra.mxu0 0.0
      %461 = vmatpush.msra.mxu0 %v427
      %462 = vmatpush.msra.mxu0 %v424
      %463 = vmatpush.msra.mxu0 %v421
      %464 = vmatpush.msra.mxu0 %v418
      %465 = vmatpush.msra.mxu0 %v415
      %466 = vmatpush.msra.mxu0 %v412
      %467 = vmatpush.msra.mxu0 %v409
      %468 = vmatpush.msra.mxu0 %v406
      %469 = vmatmul.f32.gmra.mxu0 %v431
      %v470 = vpop.f32.mrf.mxu0
      %v471 = vadd.f32 0.0, %v470
      %472 = vdwg.mxu0
      %473 = vmatpush.msra.mxu0 0.0
      %474 = vmatpush.msra.mxu0 0.0
      %475 = vmatpush.msra.mxu0 0.0
      %476 = vmatpush.msra.mxu0 0.0
      %477 = vmatpush.msra.mxu0 0.0
      %478 = vmatpush.msra.mxu0 0.0
      %479 = vmatpush.msra.mxu0 0.0
      %480 = vmatpush.msra.mxu0 0.0
      %481 = vmatpush.msra.mxu0 %v428
      %482 = vmatpush.msra.mxu0 %v425
      %483 = vmatpush.msra.mxu0 %v422
      %484 = vmatpush.msra.mxu0 %v419
      %485 = vmatpush.msra.mxu0 %v416
      %486 = vmatpush.msra.mxu0 %v413
      %487 = vmatpush.msra.mxu0 %v410
      %488 = vmatpush.msra.mxu0 %v407
      %489 = vmatmul.f32.gmra.mxu0 %v431
      %v490 = vpop.f32.mrf.mxu0
      %v491 = vadd.f32 0.0, %v490
      %492 = vdwg.mxu0
      %496 = vrot.lane.b32.xlu0 %v451, 19
      %v497 = vpop.permute.xlu0 %496
      %498 = vrot.lane.b32.xlu0 %v471, 19
      %v499 = vpop.permute.xlu0 %498
      %500 = vrot.lane.b32.xlu0 %v491, 19
      %v501 = vpop.permute.xlu0 %500
      %vm502 = vcmask 154624
      %v503 = vsel %vm502, %v497, %v499
      %v504 = vsel %vm502, %v499, %v501
      %v508 = vsel %vm502, 0.0, %v497
      %vm509 = vcmask 711680
      %v510 = vsel %vm509, %v504, 0.0
      %513 = vrot.lane.b32.xlu0 %v508, 127
      %v514 = vpop.permute.xlu0 %513
      %515 = vrot.lane.b32.xlu0 %v503, 127
      %v516 = vpop.permute.xlu0 %515
      %517 = vrot.lane.b32.xlu0 %v510, 127
      %v518 = vpop.permute.xlu0 %517
      %vm519 = vcmask 1039360
      %v520 = vsel %vm519, %v514, %v516
      %v521 = vsel %vm519, %v516, %v518
      %525 = vrot.lane.b32.xlu0 %v508, 126
      %v526 = vpop.permute.xlu0 %525
      %527 = vrot.lane.b32.xlu0 %v503, 126
      %v528 = vpop.permute.xlu0 %527
      %529 = vrot.lane.b32.xlu0 %v510, 126
      %v530 = vpop.permute.xlu0 %529
      %vm531 = vcmask 1031168
      %v532 = vsel %vm531, %v526, %v528
      %v533 = vsel %vm531, %v528, %v530
      %537 = vrot.lane.b32.xlu0 %v508, 110
      %v538 = vpop.permute.xlu0 %537
      %539 = vrot.lane.b32.xlu0 %v503, 110
      %v540 = vpop.permute.xlu0 %539
      %541 = vrot.lane.b32.xlu0 %v510, 110
      %v542 = vpop.permute.xlu0 %541
      %vm543 = vcmask 900096
      %v544 = vsel %vm543, %v538, %v540
      %v545 = vsel %vm543, %v540, %v542
      %549 = vrot.lane.b32.xlu0 %v508, 109
      %v550 = vpop.permute.xlu0 %549
      %551 = vrot.lane.b32.xlu0 %v503, 109
      %v552 = vpop.permute.xlu0 %551
      %553 = vrot.lane.b32.xlu0 %v510, 109
      %v554 = vpop.permute.xlu0 %553
      %vm555 = vcmask 891904
      %v556 = vsel %vm555, %v550, %v552
      %v557 = vsel %vm555, %v552, %v554
      %561 = vrot.lane.b32.xlu0 %v508, 108
      %v562 = vpop.permute.xlu0 %561
      %563 = vrot.lane.b32.xlu0 %v503, 108
      %v564 = vpop.permute.xlu0 %563
      %565 = vrot.lane.b32.xlu0 %v510, 108
      %v566 = vpop.permute.xlu0 %565
      %vm567 = vcmask 883712
      %v568 = vsel %vm567, %v562, %v564
      %v569 = vsel %vm567, %v564, %v566
      %573 = vrot.lane.b32.xlu0 %v508, 92
      %v574 = vpop.permute.xlu0 %573
      %575 = vrot.lane.b32.xlu0 %v503, 92
      %v576 = vpop.permute.xlu0 %575
      %577 = vrot.lane.b32.xlu0 %v510, 92
      %v578 = vpop.permute.xlu0 %577
      %vm579 = vcmask 752640
      %v580 = vsel %vm579, %v574, %v576
      %v581 = vsel %vm579, %v576, %v578
      %585 = vrot.lane.b32.xlu0 %v508, 91
      %v586 = vpop.permute.xlu0 %585
      %587 = vrot.lane.b32.xlu0 %v503, 91
      %v588 = vpop.permute.xlu0 %587
      %589 = vrot.lane.b32.xlu0 %v510, 91
      %v590 = vpop.permute.xlu0 %589
      %vm591 = vcmask 744448
      %v592 = vsel %vm591, %v586, %v588
      %v593 = vsel %vm591, %v588, %v590
      %597 = vrot.lane.b32.xlu0 %v508, 90
      %v598 = vpop.permute.xlu0 %597
      %599 = vrot.lane.b32.xlu0 %v503, 90
      %v600 = vpop.permute.xlu0 %599
      %601 = vrot.lane.b32.xlu0 %v510, 90
      %v602 = vpop.permute.xlu0 %601
      %vm603 = vcmask 736256
      %v604 = vsel %vm603, %v598, %v600
      %v605 = vsel %vm603, %v600, %v602
      %v609 = vld [vmem:[%s5] sm:$0xf]
      %v610 = vld [vmem:[%s6] sm:$0xf]
      %612 = vset.pattern.permute.xlu0 0
      %613 = vperm.xlu0 %612, %v610
      %v614 = vpop.permute.xlu0 %613
      %vm616 = vcmask 588800
      %v618 = vsel %vm616, %v609, 0
      %620 = vmatpush.msra.mxu0 0.0
      %621 = vmatpush.msra.mxu0 0.0
      %622 = vmatpush.msra.mxu0 0.0
      %623 = vmatpush.msra.mxu0 0.0
      %624 = vmatpush.msra.mxu0 0.0
      %625 = vmatpush.msra.mxu0 0.0
      %626 = vmatpush.msra.mxu0 0.0
      %627 = vmatpush.msra.mxu0 %v604
      %628 = vmatpush.msra.mxu0 %v592
      %629 = vmatpush.msra.mxu0 %v580
      %630 = vmatpush.msra.mxu0 %v568
      %631 = vmatpush.msra.mxu0 %v556
      %632 = vmatpush.msra.mxu0 %v544
      %633 = vmatpush.msra.mxu0 %v532
      %634 = vmatpush.msra.mxu0 %v520
      %635 = vmatpush.msra.mxu0 %v508
      %636 = vmatmul.f32.gmra.mxu0 %v618
      %v637 = vpop.f32.mrf.mxu0
      %v638 = vadd.f32 %v614, %v637
      %639 = vdwg.mxu0
      %640 = vmatpush.msra.mxu0 0.0
      %641 = vmatpush.msra.mxu0 0.0
      %642 = vmatpush.msra.mxu0 0.0
      %643 = vmatpush.msra.mxu0 0.0
      %644 = vmatpush.msra.mxu0 0.0
      %645 = vmatpush.msra.mxu0 0.0
      %646 = vmatpush.msra.mxu0 0.0
      %647 = vmatpush.msra.mxu0 %v605
      %648 = vmatpush.msra.mxu0 %v593
      %649 = vmatpush.msra.mxu0 %v581
      %650 = vmatpush.msra.mxu0 %v569
      %651 = vmatpush.msra.mxu0 %v557
      %652 = vmatpush.msra.mxu0 %v545
      %653 = vmatpush.msra.mxu0 %v533
      %654 = vmatpush.msra.mxu0 %v521
      %655 = vmatpush.msra.mxu0 %v503
      %656 = vmatmul.f32.gmra.mxu0 %v618
      %v657 = vpop.f32.mrf.mxu0
      %v658 = vadd.f32 %v614, %v657
      %659 = vdwg.mxu0
      %660 = vmatpush.msra.mxu0 0.0
      %661 = vmatpush.msra.mxu0 0.0
      %662 = vmatpush.msra.mxu0 0.0
      %663 = vmatpush.msra.mxu0 0.0
      %664 = vmatpush.msra.mxu0 0.0
      %665 = vmatpush.msra.mxu0 0.0
      %666 = vmatpush.msra.mxu0 0.0
      %667 = vmatpush.msra.mxu0 %v602
      %668 = vmatpush.msra.mxu0 %v590
      %669 = vmatpush.msra.mxu0 %v578
      %670 = vmatpush.msra.mxu0 %v566
      %671 = vmatpush.msra.mxu0 %v554
      %672 = vmatpush.msra.mxu0 %v542
      %673 = vmatpush.msra.mxu0 %v530
      %674 = vmatpush.msra.mxu0 %v518
      %675 = vmatpush.msra.mxu0 %v510
      %676 = vmatmul.f32.gmra.mxu0 %v618
      %v677 = vpop.f32.mrf.mxu0
      %v678 = vadd.f32 %v614, %v677
      %679 = vdwg.mxu0
      %v680 = vld [vmem:[%s3] sm:$0x7]
      %v682 = vperm.slane %v680, 0
      %v683 = vperm.slane %v680, 1
      %v684 = vperm.slane %v680, 2
      %v688 = vmul.f32 %v638, %v682
      %v689 = vmul.f32 %v658, %v683
      %v690 = vmul.f32 %v678, %v684
      %v691 = vld [vmem:[%s398] sm:$0xff]
      %v692 = vld [vmem:[%s398 + $0x8] sm:$0xf]
      %s695 = scalar_lea.vmem [#allocation1], 1
      %696 = vst [vmem:[%s695] ss:$2 sm:$0xff] %v691
      %s697 = scalar_lea.vmem [#allocation1], 17
      %698 = vst [vmem:[%s697] ss:$2 sm:$0xff] %v692
      %v699 = vld.sshfl [vmem:[#allocation1] sm:$0xff pattern:$0x75316420]
      %v700 = vld.sshfl [vmem:[#allocation1 + $0x8] sm:$0xff pattern:$0x75316420]
      %v701 = vld.sshfl [vmem:[#allocation1 + $0x10] sm:$0xff pattern:$0x75316420]
      %vm705 = vcmask 1043456
      %v706 = vsel %vm705, %v688, %v699
      %v707 = vsel %vm705, %v689, %v700
      %v708 = vsel %vm705, %v690, %v701
      %712 = vrot.lane.b32.xlu0 %v706, 19
      %v713 = vpop.permute.xlu0 %712
      %714 = vrot.lane.b32.xlu0 %v707, 19
      %v715 = vpop.permute.xlu0 %714
      %716 = vrot.lane.b32.xlu0 %v708, 19
      %v717 = vpop.permute.xlu0 %716
      %v718 = vsel %vm502, %v713, %v715
      %v719 = vsel %vm502, %v715, %v717
      %v723 = vsel %vm502, 0.0, %v713
      %v724 = vsel %vm509, %v719, 0.0
      %727 = vrot.lane.b32.xlu0 %v723, 127
      %v728 = vpop.permute.xlu0 %727
      %729 = vrot.lane.b32.xlu0 %v718, 127
      %v730 = vpop.permute.xlu0 %729
      %731 = vrot.lane.b32.xlu0 %v724, 127
      %v732 = vpop.permute.xlu0 %731
      %v733 = vsel %vm519, %v728, %v730
      %v734 = vsel %vm519, %v730, %v732
      %738 = vrot.lane.b32.xlu0 %v723, 126
      %v739 = vpop.permute.xlu0 %738
      %740 = vrot.lane.b32.xlu0 %v718, 126
      %v741 = vpop.permute.xlu0 %740
      %742 = vrot.lane.b32.xlu0 %v724, 126
      %v743 = vpop.permute.xlu0 %742
      %v744 = vsel %vm531, %v739, %v741
      %v745 = vsel %vm531, %v741, %v743
      %749 = vrot.lane.b32.xlu0 %v723, 110
      %v750 = vpop.permute.xlu0 %749
      %751 = vrot.lane.b32.xlu0 %v718, 110
      %v752 = vpop.permute.xlu0 %751
      %753 = vrot.lane.b32.xlu0 %v724, 110
      %v754 = vpop.permute.xlu0 %753
      %v755 = vsel %vm543, %v750, %v752
      %v756 = vsel %vm543, %v752, %v754
      %760 = vrot.lane.b32.xlu0 %v723, 109
      %v761 = vpop.permute.xlu0 %760
      %762 = vrot.lane.b32.xlu0 %v718, 109
      %v763 = vpop.permute.xlu0 %762
      %764 = vrot.lane.b32.xlu0 %v724, 109
      %v765 = vpop.permute.xlu0 %764
      %v766 = vsel %vm555, %v761, %v763
      %v767 = vsel %vm555, %v763, %v765
      %771 = vrot.lane.b32.xlu0 %v723, 108
      %v772 = vpop.permute.xlu0 %771
      %773 = vrot.lane.b32.xlu0 %v718, 108
      %v774 = vpop.permute.xlu0 %773
      %775 = vrot.lane.b32.xlu0 %v724, 108
      %v776 = vpop.permute.xlu0 %775
      %v777 = vsel %vm567, %v772, %v774
      %v778 = vsel %vm567, %v774, %v776
      %782 = vrot.lane.b32.xlu0 %v723, 92
      %v783 = vpop.permute.xlu0 %782
      %784 = vrot.lane.b32.xlu0 %v718, 92
      %v785 = vpop.permute.xlu0 %784
      %786 = vrot.lane.b32.xlu0 %v724, 92
      %v787 = vpop.permute.xlu0 %786
      %v788 = vsel %vm579, %v783, %v785
      %v789 = vsel %vm579, %v785, %v787
      %793 = vrot.lane.b32.xlu0 %v723, 91
      %v794 = vpop.permute.xlu0 %793
      %795 = vrot.lane.b32.xlu0 %v718, 91
      %v796 = vpop.permute.xlu0 %795
      %797 = vrot.lane.b32.xlu0 %v724, 91
      %v798 = vpop.permute.xlu0 %797
      %v799 = vsel %vm591, %v794, %v796
      %v800 = vsel %vm591, %v796, %v798
      %804 = vrot.lane.b32.xlu0 %v723, 90
      %v805 = vpop.permute.xlu0 %804
      %806 = vrot.lane.b32.xlu0 %v718, 90
      %v807 = vpop.permute.xlu0 %806
      %808 = vrot.lane.b32.xlu0 %v724, 90
      %v809 = vpop.permute.xlu0 %808
      %v810 = vsel %vm603, %v805, %v807
      %v811 = vsel %vm603, %v807, %v809
      %v815 = vld [vmem:[%s7] sm:$0xf]
      %v816 = vld [vmem:[%s8] sm:$0xf]
      %818 = vset.pattern.permute.xlu0 0
      %819 = vperm.xlu0 %818, %v816
      %v820 = vpop.permute.xlu0 %819
      %v823 = vsel %vm616, %v815, 0
      %825 = vmatpush.msra.mxu0 0.0
      %826 = vmatpush.msra.mxu0 0.0
      %827 = vmatpush.msra.mxu0 0.0
      %828 = vmatpush.msra.mxu0 0.0
      %829 = vmatpush.msra.mxu0 0.0
      %830 = vmatpush.msra.mxu0 0.0
      %831 = vmatpush.msra.mxu0 0.0
      %832 = vmatpush.msra.mxu0 %v810
      %833 = vmatpush.msra.mxu0 %v799
      %834 = vmatpush.msra.mxu0 %v788
      %835 = vmatpush.msra.mxu0 %v777
      %836 = vmatpush.msra.mxu0 %v766
      %837 = vmatpush.msra.mxu0 %v755
      %838 = vmatpush.msra.mxu0 %v744
      %839 = vmatpush.msra.mxu0 %v733
      %840 = vmatpush.msra.mxu0 %v723
      %841 = vmatmul.f32.gmra.mxu0 %v823
      %v842 = vpop.f32.mrf.mxu0
      %v843 = vadd.f32 %v820, %v842
      %844 = vdwg.mxu0
      %845 = vmatpush.msra.mxu0 0.0
      %846 = vmatpush.msra.mxu0 0.0
      %847 = vmatpush.msra.mxu0 0.0
      %848 = vmatpush.msra.mxu0 0.0
      %849 = vmatpush.msra.mxu0 0.0
      %850 = vmatpush.msra.mxu0 0.0
      %851 = vmatpush.msra.mxu0 0.0
      %852 = vmatpush.msra.mxu0 %v811
      %853 = vmatpush.msra.mxu0 %v800
      %854 = vmatpush.msra.mxu0 %v789
      %855 = vmatpush.msra.mxu0 %v778
      %856 = vmatpush.msra.mxu0 %v767
      %857 = vmatpush.msra.mxu0 %v756
      %858 = vmatpush.msra.mxu0 %v745
      %859 = vmatpush.msra.mxu0 %v734
      %860 = vmatpush.msra.mxu0 %v718
      %861 = vmatmul.f32.gmra.mxu0 %v823
      %v862 = vpop.f32.mrf.mxu0
      %v863 = vadd.f32 %v820, %v862
      %864 = vdwg.mxu0
      %865 = vmatpush.msra.mxu0 0.0
      %866 = vmatpush.msra.mxu0 0.0
      %867 = vmatpush.msra.mxu0 0.0
      %868 = vmatpush.msra.mxu0 0.0
      %869 = vmatpush.msra.mxu0 0.0
      %870 = vmatpush.msra.mxu0 0.0
      %871 = vmatpush.msra.mxu0 0.0
      %872 = vmatpush.msra.mxu0 %v809
      %873 = vmatpush.msra.mxu0 %v798
      %874 = vmatpush.msra.mxu0 %v787
      %875 = vmatpush.msra.mxu0 %v776
      %876 = vmatpush.msra.mxu0 %v765
      %877 = vmatpush.msra.mxu0 %v754
      %878 = vmatpush.msra.mxu0 %v743
      %879 = vmatpush.msra.mxu0 %v732
      %880 = vmatpush.msra.mxu0 %v724
      %881 = vmatmul.f32.gmra.mxu0 %v823
      %v882 = vpop.f32.mrf.mxu0
      %v883 = vadd.f32 %v820, %v882
      %884 = vdwg.mxu0
      %v885 = vmax.f32 %v843, 0.0
      %v886 = vmax.f32 %v863, 0.0
      %v887 = vmax.f32 %v883, 0.0
      %v888 = vld [vmem:[%s4] sm:$0x7]
      %v890 = vperm.slane %v888, 0
      %v891 = vperm.slane %v888, 1
      %v892 = vperm.slane %v888, 2
      %v896 = vmul.f32 %v885, %v890
      %v897 = vmul.f32 %v886, %v891
      %v898 = vmul.f32 %v887, %v892
      %902 = vrot.lane.b32.xlu0 %v896, 19
      %v903 = vpop.permute.xlu0 %902
      %904 = vrot.lane.b32.xlu0 %v897, 19
      %v905 = vpop.permute.xlu0 %904
      %906 = vrot.lane.b32.xlu0 %v898, 19
      %v907 = vpop.permute.xlu0 %906
      %v908 = vsel %vm502, %v903, %v905
      %v909 = vsel %vm502, %v905, %v907
      %v913 = vsel %vm502, 0.0, %v903
      %v914 = vsel %vm509, %v909, 0.0
      %v917 = vrot.slane %v913, 4
      %v918 = vrot.slane %v908, 4
      %v919 = vrot.slane %v914, 4
      %920 = vrot.lane.b32.xlu0 %v917, 127
      %v921 = vpop.permute.xlu0 %920
      %922 = vrot.lane.b32.xlu0 %v918, 127
      %v923 = vpop.permute.xlu0 %922
      %924 = vrot.lane.b32.xlu0 %v919, 127
      %v925 = vpop.permute.xlu0 %924
      %v926 = vsel %vm519, %v921, %v923
      %v927 = vsel %vm519, %v923, %v925
      %931 = vrot.lane.b32.xlu0 %v913, 126
      %v932 = vpop.permute.xlu0 %931
      %933 = vrot.lane.b32.xlu0 %v908, 126
      %v934 = vpop.permute.xlu0 %933
      %935 = vrot.lane.b32.xlu0 %v914, 126
      %v936 = vpop.permute.xlu0 %935
      %v937 = vsel %vm531, %v932, %v934
      %v938 = vsel %vm531, %v934, %v936
      %942 = vrot.lane.b32.xlu0 %v917, 110
      %v943 = vpop.permute.xlu0 %942
      %944 = vrot.lane.b32.xlu0 %v918, 110
      %v945 = vpop.permute.xlu0 %944
      %946 = vrot.lane.b32.xlu0 %v919, 110
      %v947 = vpop.permute.xlu0 %946
      %v948 = vsel %vm543, %v943, %v945
      %v949 = vsel %vm543, %v945, %v947
      %953 = vrot.lane.b32.xlu0 %v913, 109
      %v954 = vpop.permute.xlu0 %953
      %955 = vrot.lane.b32.xlu0 %v908, 109
      %v956 = vpop.permute.xlu0 %955
      %957 = vrot.lane.b32.xlu0 %v914, 109
      %v958 = vpop.permute.xlu0 %957
      %v959 = vsel %vm555, %v954, %v956
      %v960 = vsel %vm555, %v956, %v958
      %964 = vrot.lane.b32.xlu0 %v917, 108
      %v965 = vpop.permute.xlu0 %964
      %966 = vrot.lane.b32.xlu0 %v918, 108
      %v967 = vpop.permute.xlu0 %966
      %968 = vrot.lane.b32.xlu0 %v919, 108
      %v969 = vpop.permute.xlu0 %968
      %v970 = vsel %vm567, %v965, %v967
      %v971 = vsel %vm567, %v967, %v969
      %975 = vrot.lane.b32.xlu0 %v913, 92
      %v976 = vpop.permute.xlu0 %975
      %977 = vrot.lane.b32.xlu0 %v908, 92
      %v978 = vpop.permute.xlu0 %977
      %979 = vrot.lane.b32.xlu0 %v914, 92
      %v980 = vpop.permute.xlu0 %979
      %v981 = vsel %vm579, %v976, %v978
      %v982 = vsel %vm579, %v978, %v980
      %986 = vrot.lane.b32.xlu0 %v917, 91
      %v987 = vpop.permute.xlu0 %986
      %988 = vrot.lane.b32.xlu0 %v918, 91
      %v989 = vpop.permute.xlu0 %988
      %990 = vrot.lane.b32.xlu0 %v919, 91
      %v991 = vpop.permute.xlu0 %990
      %v992 = vsel %vm591, %v987, %v989
      %v993 = vsel %vm591, %v989, %v991
      %997 = vrot.lane.b32.xlu0 %v913, 90
      %v998 = vpop.permute.xlu0 %997
      %999 = vrot.lane.b32.xlu0 %v908, 90
      %v1000 = vpop.permute.xlu0 %999
      %1001 = vrot.lane.b32.xlu0 %v914, 90
      %v1002 = vpop.permute.xlu0 %1001
      %v1003 = vsel %vm603, %v998, %v1000
      %v1004 = vsel %vm603, %v1000, %v1002
      %v1005 = vsel %vm705, %v913, %v926
      %v1006 = vsel %vm705, %v908, %v927
      %v1007 = vsel %vm705, %v914, %v925
      %v1008 = vsel %vm705, %v937, %v948
      %v1009 = vsel %vm705, %v938, %v949
      %v1010 = vsel %vm705, %v936, %v947
      %v1011 = vsel %vm705, %v959, %v970
      %v1012 = vsel %vm705, %v960, %v971
      %v1013 = vsel %vm705, %v958, %v969
      %v1014 = vsel %vm705, %v981, %v992
      %v1015 = vsel %vm705, %v982, %v993
      %v1016 = vsel %vm705, %v980, %v991
      %v1017 = vld [vmem:[%s9] sm:$0xf]
      %v1018 = vld [vmem:[%s10] sm:$0xf]
      %1020 = vset.pattern.permute.xlu0 0
      %1021 = vperm.xlu0 %1020, %v1018
      %v1022 = vpop.permute.xlu0 %1021
      %vm1024 = vcmask 293888
      %v1026 = vsel %vm1024, %v1017, 0
      %v1028 = vsel %vm705, %v1003, 0
      %v1030 = vsel %vm705, %v1004, 0
      %v1032 = vsel %vm705, %v1002, 0
      %1034 = vmatpush.msra.mxu0 0.0
      %1035 = vmatpush.msra.mxu0 0.0
      %1036 = vmatpush.msra.mxu0 0.0
      %1037 = vmatpush.msra.mxu0 0.0
      %1038 = vmatpush.msra.mxu0 0.0
      %1039 = vmatpush.msra.mxu0 0.0
      %1040 = vmatpush.msra.mxu0 0.0
      %1041 = vmatpush.msra.mxu0 0.0
      %1042 = vmatpush.msra.mxu0 0.0
      %1043 = vmatpush.msra.mxu0 0.0
      %1044 = vmatpush.msra.mxu0 0.0
      %1045 = vmatpush.msra.mxu0 %v1028
      %1046 = vmatpush.msra.mxu0 %v1014
      %1047 = vmatpush.msra.mxu0 %v1011
      %1048 = vmatpush.msra.mxu0 %v1008
      %1049 = vmatpush.msra.mxu0 %v1005
      %1050 = vmatmul.f32.gmra.mxu0 %v1026
      %v1051 = vpop.f32.mrf.mxu0
      %v1052 = vadd.f32 %v1022, %v1051
      %1053 = vdwg.mxu0
      %1054 = vmatpush.msra.mxu0 0.0
      %1055 = vmatpush.msra.mxu0 0.0
      %1056 = vmatpush.msra.mxu0 0.0
      %1057 = vmatpush.msra.mxu0 0.0
      %1058 = vmatpush.msra.mxu0 0.0
      %1059 = vmatpush.msra.mxu0 0.0
      %1060 = vmatpush.msra.mxu0 0.0
      %1061 = vmatpush.msra.mxu0 0.0
      %1062 = vmatpush.msra.mxu0 0.0
      %1063 = vmatpush.msra.mxu0 0.0
      %1064 = vmatpush.msra.mxu0 0.0
      %1065 = vmatpush.msra.mxu0 %v1030
      %1066 = vmatpush.msra.mxu0 %v1015
      %1067 = vmatpush.msra.mxu0 %v1012
      %1068 = vmatpush.msra.mxu0 %v1009
      %1069 = vmatpush.msra.mxu0 %v1006
      %1070 = vmatmul.f32.gmra.mxu0 %v1026
      %v1071 = vpop.f32.mrf.mxu0
      %v1072 = vadd.f32 %v1022, %v1071
      %1073 = vdwg.mxu0
      %1074 = vmatpush.msra.mxu0 0.0
      %1075 = vmatpush.msra.mxu0 0.0
      %1076 = vmatpush.msra.mxu0 0.0
      %1077 = vmatpush.msra.mxu0 0.0
      %1078 = vmatpush.msra.mxu0 0.0
      %1079 = vmatpush.msra.mxu0 0.0
      %1080 = vmatpush.msra.mxu0 0.0
      %1081 = vmatpush.msra.mxu0 0.0
      %1082 = vmatpush.msra.mxu0 0.0
      %1083 = vmatpush.msra.mxu0 0.0
      %1084 = vmatpush.msra.mxu0 0.0
      %1085 = vmatpush.msra.mxu0 %v1032
      %1086 = vmatpush.msra.mxu0 %v1016
      %1087 = vmatpush.msra.mxu0 %v1013
      %1088 = vmatpush.msra.mxu0 %v1010
      %1089 = vmatpush.msra.mxu0 %v1007
      %1090 = vmatmul.f32.gmra.mxu0 %v1026
      %v1091 = vpop.f32.mrf.mxu0
      %v1092 = vadd.f32 %v1022, %v1091
      %1093 = vdwg.mxu0
      %v1094 = vmax.f32 %v1052, 0.0
      %v1095 = vmax.f32 %v1072, 0.0
      %v1096 = vmax.f32 %v1092, 0.0
      %v1099 = vrot.slane %v1095, 4
      %v1100 = vsel %vm705, %v1094, %v1099
      %1102 = vst [vmem:[%s403] sm:$0xff] %v1100
      %vm1103 = vcmask 551936
      %1104 = vst.msk [vmem:[%s403 + $0x8] sm:$0xf] %vm1103, %v1096
      %p1105 = scmp.lt.s32.totalorder %s22, 1
      %s1106 = scalar_select %p1105, %s22, 1
      %s1107 = smul.addr %s1106, 3
      %s1108 = smul.addr %s1107, 4
      %s1109 = scalar_lea.vmem %s11, %s1108
      // Predicated region
      $region65: #{expanding_block_forward.1} parent=63 // pred_check
        %p1110 = pneg %p281
      $region66: #{expanding_block_forward.1} parent=63 // pred_check_branch
        %1112 = sbr.rel (%p1110) target = $region68
      $region67: #{expanding_block_forward.1} parent=63 // pred_region
        _
      $region68: #{expanding_block_forward.1} parent=63 // pred_fallthru
        _
    $region64: #{expanding_block_forward.1} parent=5 // pred_fallthru
      _
    %p1113 = scmp.le.s32.totalorder 2, %s17
    // Predicated region
    $region69: #{expanding_block_forward.1} parent=5 // pred_check
      %p1114 = pneg %p1113
    $region70: #{expanding_block_forward.1} parent=5 // pred_check_branch
      %1116 = sbr.rel (%p1114) target = $region72
    $region71: #{expanding_block_forward.1} parent=5 // pred_region
      %s1117 = ssub.s32 %s17, 2
      // Predicated region
      $region73: #{expanding_block_forward.1} parent=71 // pred_check
        %p1118 = pneg %p287
      $region74: #{expanding_block_forward.1} parent=71 // pred_check_branch
        %1120 = sbr.rel (%p1118) target = $region76
      $region75: #{expanding_block_forward.1} parent=71 // pred_region
        %p1121 = scmp.lt.s32.totalorder %s23, 1
        %s1122 = scalar_select %p1121, %s23, 1
        %s1123 = smul.addr %s1122, 3
        %s1124 = smul.addr %s1123, 4
        %s1125 = scalar_lea.vmem %s11, %s1124
      $region76: #{expanding_block_forward.1} parent=71 // pred_fallthru
        _
    $region72: #{expanding_block_forward.1} parent=5 // pred_fallthru
      _
  $region6: #{expanding_block_forward.1} parent=0 // loop_footer
    %s21 = sadd.s32 1, %s17
  $region7: #{expanding_block_forward.1} parent=0 // loop_footer_branch
    %16 = sbr.rel target = $region3
  $region8: #{expanding_block_forward.1} parent=0 // loop_exit
    _

</llo_original>
